<compile_context>
chip_gen: v5e
topology: v5e:2x2
jax: 0.10.0
libtpu: 0.0.40
codegen_flags: <defaults>
</compile_context>

<pallas_src>
import jax
import jax.numpy as jnp
import numpy as np
from jax import lax
from jax.experimental import pallas as pl
from jax.experimental.pallas import tpu as pltpu


_VMEM_LIMIT = 48 * 1024 * 1024      # above scoped defaults; >=25% headroom on v7x


def _round_up(x, m):
    return (x + m - 1) // m * m


# ----------------------------------------------------------------------------
# Fast path: tables resident in VMEM, one-hot MXU gather, lane-dense epilogue.
# ----------------------------------------------------------------------------
def _glove_vmem_tables(v, w, i_p, j_p, logco, a_row, b_row, c_row,
                       tb, num_splits, tiles_per_split):
    V, E = int(v.shape[0]), int(v.shape[1])
    V_pad = _round_up(V, 128)       # lane / contraction aligned one-hot matmul
    E_pad = _round_up(E, 8)         # sublane aligned
    # Transposed, zero-padded resident tables: batch stays on the lane axis all
    # the way (gather -> dot-product -> epilogue); padded rows/cols are zero.
    vT = jnp.pad(v, ((0, V_pad - V), (0, E_pad - E))).T          # (E_pad, V_pad)
    wT = jnp.pad(w, ((0, V_pad - V), (0, E_pad - E))).T
    idx2 = jnp.stack([i_p, j_p], axis=0)                         # (2, b_pad) i32
    cw4 = jnp.stack([logco, a_row, b_row, c_row], axis=0)        # (4, b_pad) f32
    tdtype = vT.dtype

    def kernel(idx_ref, vT_ref, wT_ref, cw_ref, out_ref, acc_ref):
        t = pl.program_id(1)

        @pl.when(t == 0)
        def _():
            acc_ref[...] = jnp.zeros_like(acc_ref)

        # One-hot gather on the MXU: the tb requested rows of v/w land
        # transposed as (E_pad, tb) with batch on lanes.
        iota = lax.broadcasted_iota(jnp.int32, (V_pad, tb), 0)
        oh_i = (iota == idx_ref[0:1, :]).astype(tdtype)          # (V_pad, tb)
        oh_j = (iota == idx_ref[1:2, :]).astype(tdtype)
        viT = jnp.dot(vT_ref[...], oh_i, preferred_element_type=jnp.float32)
        wjT = jnp.dot(wT_ref[...], oh_j, preferred_element_type=jnp.float32)
        sim = jnp.sum(viT * wjT, axis=0, keepdims=True)          # (1, tb)

        col = sim - cw_ref[0:1, :]                               # sim - log(co)
        acc_ref[...] += (cw_ref[1:2, :] * col * col
                         + cw_ref[2:3, :] * col
                         + cw_ref[3:4, :])

        @pl.when(t == pl.num_programs(1) - 1)
        def _():
            out_ref[...] = jnp.sum(acc_ref[...], keepdims=True)

    grid_spec = pltpu.PrefetchScalarGridSpec(
        num_scalar_prefetch=0,
        grid=(num_splits, tiles_per_split),
        in_specs=[
            pl.BlockSpec((2, tb), lambda s, t: (0, s * tiles_per_split + t)),
            pl.BlockSpec((E_pad, V_pad), lambda s, t: (0, 0)),   # resident table
            pl.BlockSpec((E_pad, V_pad), lambda s, t: (0, 0)),   # resident table
            pl.BlockSpec((4, tb), lambda s, t: (0, s * tiles_per_split + t)),
        ],
        out_specs=pl.BlockSpec((1, 1), lambda s, t: (s, 0)),
        scratch_shapes=[pltpu.VMEM((1, tb), jnp.float32)],       # lane-dense accumulator
    )
    out = pl.pallas_call(
        kernel,
        out_shape=jax.ShapeDtypeStruct((num_splits, 1), jnp.float32),
        grid_spec=grid_spec,
        compiler_params=pltpu.CompilerParams(
            dimension_semantics=("parallel", "arbitrary"),       # v7x: split across TCs
            vmem_limit_bytes=_VMEM_LIMIT),
    )(idx2, vT, wT, cw4)
    return jnp.sum(out)


# ----------------------------------------------------------------------------
# Fallback: large vocab.  Tables stay in HBM; rows are gathered with manual,
# double-buffered DMAs driven by pl.loop (no unrolled scalar-op blowup).
# ----------------------------------------------------------------------------
def _glove_hbm_gather(v, w, i_p, j_p, logco, a_row, b_row, c_row,
                      tb, num_splits, tiles_per_split):
    V, E = int(v.shape[0]), int(v.shape[1])
    assert v.shape == w.shape and v.dtype == w.dtype, (
        "row-DMA wait accounting assumes identical v/w row byte sizes")
    cw4 = jnp.stack([logco, a_row, b_row, c_row], axis=1)        # (b_pad, 4)

    def kernel(i_sm, j_sm, v_hbm, w_hbm, cw_ref, out_ref,
               vi_buf, wj_buf, sem, acc_ref):
        s = pl.program_id(0)
        t = pl.program_id(1)
        nt = pl.num_programs(1)
        g = s * tiles_per_split + t
        slot = t % 2

        def start_gather(tile, buf_slot):
            base = tile * tb
            @pl.loop(0, tb)                       # counted loop, not unrolled
            def _(r):
                iv = i_sm[base + r]
                jv = j_sm[base + r]
                pltpu.make_async_copy(
                    v_hbm.at[pl.ds(iv, 1), :],
                    vi_buf.at[buf_slot, pl.ds(r, 1), :],
                    sem.at[buf_slot, 0]).start()
                pltpu.make_async_copy(
                    w_hbm.at[pl.ds(jv, 1), :],
                    wj_buf.at[buf_slot, pl.ds(r, 1), :],
                    sem.at[buf_slot, 1]).start()

        def wait_gather(buf_slot):
            # Every issued copy has identical shape/dtype per table, so tb
            # one-row waits per semaphore exactly account for them.
            @pl.loop(0, tb)
            def _(r):
                pltpu.make_async_copy(
                    v_hbm.at[pl.ds(0, 1), :],
                    vi_buf.at[buf_slot, pl.ds(0, 1), :],
                    sem.at[buf_slot, 0]).wait()
                pltpu.make_async_copy(
                    w_hbm.at[pl.ds(0, 1), :],
                    wj_buf.at[buf_slot, pl.ds(0, 1), :],
                    sem.at[buf_slot, 1]).wait()

        @pl.when(t == 0)
        def _():
            acc_ref[...] = jnp.zeros_like(acc_ref)
            start_gather(g, 0)                    # prime slot 0 for this split

        @pl.when(t + 1 < nt)                      # prefetch next tile's rows
        def _():
            start_gather(g + 1, (t + 1) % 2)

        wait_gather(slot)

        vi = vi_buf[slot].astype(jnp.float32)     # (tb, E) — f32 math even for bf16 tables
        wj = wj_buf[slot].astype(jnp.float32)
        sim = jnp.sum(vi * wj, axis=1, keepdims=True)            # (tb, 1)
        col = sim - cw_ref[:, 0:1]
        acc_ref[...] += (cw_ref[:, 1:2] * col * col
                         + cw_ref[:, 2:3] * col
                         + cw_ref[:, 3:4])

        @pl.when(t == nt - 1)
        def _():
            out_ref[...] = jnp.sum(acc_ref[...], keepdims=True)

    grid_spec = pltpu.PrefetchScalarGridSpec(
        num_scalar_prefetch=2,                                   # i, j -> SMEM
        grid=(num_splits, tiles_per_split),
        in_specs=[
            pl.BlockSpec(memory_space=pl.ANY),                   # v table (HBM, manual DMA)
            pl.BlockSpec(memory_space=pl.ANY),                   # w table (HBM, manual DMA)
            pl.BlockSpec((tb, 4),
                         lambda s, t, i_sm, j_sm: (s * tiles_per_split + t, 0)),
        ],
        out_specs=pl.BlockSpec((1, 1), lambda s, t, i_sm, j_sm: (s, 0)),
        scratch_shapes=[
            pltpu.VMEM((2, tb, E), v.dtype),                     # double-buffered vi rows
            pltpu.VMEM((2, tb, E), w.dtype),                     # double-buffered wj rows
            pltpu.SemaphoreType.DMA((2, 2)),                     # [slot, table]
            pltpu.VMEM((tb, 1), jnp.float32),                    # per-row accumulator
        ],
    )
    out = pl.pallas_call(
        kernel,
        out_shape=jax.ShapeDtypeStruct((num_splits, 1), jnp.float32),
        grid_spec=grid_spec,
        compiler_params=pltpu.CompilerParams(
            dimension_semantics=("parallel", "arbitrary"),
            vmem_limit_bytes=_VMEM_LIMIT),
    )(i_p, j_p, v, w, cw4)
    return jnp.sum(out)


# ----------------------------------------------------------------------------
# Wrapper
# ----------------------------------------------------------------------------
def glove_forward_pallas(params, i, j, co_occur, weight, *, block_b=256,
                         table_in_vmem=None, num_splits=None):
    v = params["v"]                               # (V, E)
    w = params["w"]                               # (V, E)
    V, E = int(v.shape[0]), int(v.shape[1])
    B = int(i.shape[0])
    itemsize = jnp.dtype(v.dtype).itemsize

    # ---- O(B) wrapper glue: bias gathers + collapsed-broadcast constants ----
    brow = (params["biasv"][i, 0] + params["biasw"][j, 0]).astype(jnp.float32)
    s1 = jnp.sum(brow)
    s2 = jnp.sum(brow * brow)

    # ---- choose gather strategy ---------------------------------------------
    tb_fast = max(128, (int(block_b) // 128) * 128)              # lane-dense tile
    if table_in_vmem is None:
        est = (2 * _round_up(V, 128) * _round_up(E, 8) * itemsize   # resident tables
               + 2 * _round_up(V, 128) * tb_fast * 4                # one-hot temps
               + 4 * _round_up(E, 8) * tb_fast * 4)                 # gathered rows
        table_in_vmem = (V <= 4096) and est <= 24 * 1024 * 1024

    tb = tb_fast if table_in_vmem else max(8, (int(block_b) // 8) * 8)

    n_tiles = pl.cdiv(B, tb)
    if num_splits is None:
        num_splits = 2 if n_tiles >= 2 else 1    # v7x: one reduction stream per TC
    tiles_per_split = pl.cdiv(n_tiles, num_splits)
    b_pad = num_splits * tiles_per_split * tb
    pad = b_pad - B

    # ---- padded per-batch operands (pad rows contribute exactly 0) ----------
    i_p = jnp.pad(i.astype(jnp.int32), (0, pad))                 # pad idx -> row 0
    j_p = jnp.pad(j.astype(jnp.int32), (0, pad))
    co_p = jnp.pad(co_occur.astype(jnp.float32), (0, pad), constant_values=1.0)
    wt_p = jnp.pad(weight.astype(jnp.float32), (0, pad))         # wt=0 => zero contribution
    logco = jnp.log(co_p)
    a_row = (0.5 * float(B)) * wt_p              # true B = extent of the "a" broadcast axis
    b_row = s1 * wt_p
    c_row = (0.5 * s2) * wt_p

    if table_in_vmem:
        return _glove_vmem_tables(v, w, i_p, j_p, logco, a_row, b_row, c_row,
                                  tb, num_splits, tiles_per_split)
    return _glove_hbm_gather(v, w, i_p, j_p, logco, a_row, b_row, c_row,
                             tb, num_splits, tiles_per_split)


# ----------------------------------------------------------------------------
# float64 numpy reference with PyTorch's exact broadcasting semantics
# ----------------------------------------------------------------------------
def glove_forward_ref(params, i, j, co_occur, weight):
    v = np.asarray(params["v"], np.float64)
    w = np.asarray(params["w"], np.float64)
    bv = np.asarray(params["biasv"], np.float64)
    bw = np.asarray(params["biasw"], np.float64)
    i = np.asarray(i)
    j = np.asarray(j)
    co = np.asarray(co_occur, np.float64)
    wt = np.asarray(weight, np.float64)

    vi = v[i]                                 # (B, E)
    wj = w[j]                                 # (B, E)
    bi = bv[i]                                # (B, 1)
    bj = bw[j]                                # (B, 1)
    sim = np.sum(vi * wj, axis=1)             # (B,)
    loss = sim + bi + bj - np.log(co)         # accidental (B,) + (B,1) -> (B,B)
    loss = 0.5 * wt * loss * loss
    return loss.sum()                         # .mean() of a scalar == itself


def init_params(key, vocab_size, embed_size):
    initrange = 0.5 / embed_size
    kv, kw, kbv, kbw = jax.random.split(key, 4)
    return {
        "v": jax.random.uniform(kv, (vocab_size, embed_size), jnp.float32,
                                -initrange, initrange),
        "w": jax.random.uniform(kw, (vocab_size, embed_size), jnp.float32,
                                -initrange, initrange),
        # torch.nn.Embedding default init: N(0, 1)
        "biasv": jax.random.normal(kbv, (vocab_size, 1), dtype=jnp.float32),
        "biasw": jax.random.normal(kbw, (vocab_size, 1), dtype=jnp.float32),
    }


if __name__ == "__main__":
    vocab_size, embed_size = 96, 32
    key = jax.random.PRNGKey(0)
    params = init_params(jax.random.fold_in(key, 0), vocab_size, embed_size)

    cases = [
        dict(batch=64),                        # single tile, VMEM-table fast path
        dict(batch=13),                        # zero-weight padding path
        dict(batch=600),                       # multi-tile: 2-way core split + accumulation
        dict(batch=600, table_in_vmem=False),  # HBM row-gather fallback (large-vocab path)
    ]
    for case in cases:
        batch = case.pop("batch")
        ki, kj, kc, kw = jax.random.split(jax.random.fold_in(key, batch), 4)
        i = jax.random.randint(ki, (batch,), 0, vocab_size, dtype=jnp.int32)
        j = jax.random.randint(kj, (batch,), 0, vocab_size, dtype=jnp.int32)
        co_occur = jax.random.uniform(kc, (batch,), jnp.float32, 1.0, 10.0)
        weight = jax.random.uniform(kw, (batch,), jnp.float32, 0.1, 1.0)

        out = jax.block_until_ready(
            glove_forward_pallas(params, i, j, co_occur, weight, **case))
        ref = glove_forward_ref(params, i, j, co_occur, weight)
        assert np.allclose(float(out), float(ref), rtol=5e-4, atol=1e-2), (
            batch, case, float(out), float(ref))

    print("KERNEL_OK")
</pallas_src>

<mosaic_0001>
module attributes {stable_mosaic.version = 11 : i64} {
  func.func @kernel(%arg0: i32, %arg1: i32, %arg2: memref<2x256xi32, #tpu.memory_space<vmem>>, %arg3: memref<32x128xf32, #tpu.memory_space<vmem>>, %arg4: memref<32x128xf32, #tpu.memory_space<vmem>>, %arg5: memref<4x256xf32, #tpu.memory_space<vmem>>, %arg6: memref<1x1xf32, #tpu.memory_space<vmem>>, %arg7: memref<1x256xf32, #tpu.memory_space<vmem>>) attributes {dimension_semantics = [#tpu.dimension_semantics<parallel>, #tpu.dimension_semantics<arbitrary>], iteration_bounds = array<i64: 1, 1>, scalar_prefetch = 0 : i64, scratch_operands = 1 : i64, tpu.core_type = #tpu.core_type<tc>, window_params = [{transform_indices = @transform_0, window_bounds = array<i64: 2, 256>}, {pipeline_mode = #tpu.pipeline_mode<synchronous>, transform_indices = @transform_1, window_bounds = array<i64: 32, 128>}, {pipeline_mode = #tpu.pipeline_mode<synchronous>, transform_indices = @transform_2, window_bounds = array<i64: 32, 128>}, {transform_indices = @transform_3, window_bounds = array<i64: 4, 256>}, {transform_indices = @transform_4, window_bounds = array<i64: 1, 1>}]} {
    %c0_i32 = arith.constant 0 : i32
    %0 = arith.cmpi eq, %arg1, %c0_i32 : i32
    %1 = arith.extui %0 : i1 to i32
    %c0_i32_0 = arith.constant 0 : i32
    %2 = arith.cmpi ne, %1, %c0_i32_0 : i32
    scf.if %2 {
      %cst_21 = arith.constant 0.000000e+00 : f32
      %37 = vector.broadcast %cst_21 : f32 to vector<1x256xf32>
      %c0_22 = arith.constant 0 : index
      %c0_23 = arith.constant 0 : index
      %38 = vector.load %arg7[%c0_22, %c0_23] : memref<1x256xf32, #tpu.memory_space<vmem>>, vector<1x256xf32>
      tpu.vector_store %arg7[%c0_22, %c0_23], %37 {strides = array<i32>} : memref<1x256xf32, #tpu.memory_space<vmem>>, vector<1x256xf32>,
    } else {
    }
    %3 = tpu.iota {dimensions = array<i32: 0>} : vector<128x256xi32>
    %c0 = arith.constant 0 : index
    %c0_1 = arith.constant 0 : index
    %4 = vector.load %arg2[%c0, %c0_1] : memref<2x256xi32, #tpu.memory_space<vmem>>, vector<1x256xi32>
    %5 = vector.broadcast %4 : vector<1x256xi32> to vector<128x256xi32>
    %6 = arith.cmpi eq, %3, %5 : vector<128x256xi32>
    %7 = arith.extui %6 : vector<128x256xi1> to vector<128x256xi32>
    %8 = arith.sitofp %7 : vector<128x256xi32> to vector<128x256xf32>
    %c1 = arith.constant 1 : index
    %c0_2 = arith.constant 0 : index
    %9 = vector.load %arg2[%c1, %c0_2] : memref<2x256xi32, #tpu.memory_space<vmem>>, vector<1x256xi32>
    %10 = vector.broadcast %9 : vector<1x256xi32> to vector<128x256xi32>
    %11 = arith.cmpi eq, %3, %10 : vector<128x256xi32>
    %12 = arith.extui %11 : vector<128x256xi1> to vector<128x256xi32>
    %13 = arith.sitofp %12 : vector<128x256xi32> to vector<128x256xf32>
    %c0_3 = arith.constant 0 : index
    %c0_4 = arith.constant 0 : index
    %14 = vector.load %arg3[%c0_3, %c0_4] : memref<32x128xf32, #tpu.memory_space<vmem>>, vector<32x128xf32>
    %cst = arith.constant dense<0.000000e+00> : vector<32x256xf32>
    %15 = tpu.matmul %14, %8, %cst {dimension_numbers = #tpu.dot_dimension_numbers<[1], [0], [0], [1], [0, 0, 1, 1], [], []>} : vector<32x128xf32>, vector<128x256xf32>, vector<32x256xf32> -> vector<32x256xf32>
    %c0_5 = arith.constant 0 : index
    %c0_6 = arith.constant 0 : index
    %16 = vector.load %arg4[%c0_5, %c0_6] : memref<32x128xf32, #tpu.memory_space<vmem>>, vector<32x128xf32>
    %cst_7 = arith.constant dense<0.000000e+00> : vector<32x256xf32>
    %17 = tpu.matmul %16, %13, %cst_7 {dimension_numbers = #tpu.dot_dimension_numbers<[1], [0], [0], [1], [0, 0, 1, 1], [], []>} : vector<32x128xf32>, vector<128x256xf32>, vector<32x256xf32> -> vector<32x256xf32>
    %18 = arith.mulf %15, %17 : vector<32x256xf32>
    %cst_8 = arith.constant dense<0.000000e+00> : vector<256xf32>
    %19 = vector.multi_reduction <add>, %18, %cst_8 [0] : vector<32x256xf32> to vector<256xf32>
    %20 = vector.shape_cast %19 : vector<256xf32> to vector<1x256xf32>
    %c0_9 = arith.constant 0 : index
    %c0_10 = arith.constant 0 : index
    %21 = vector.load %arg5[%c0_9, %c0_10] : memref<4x256xf32, #tpu.memory_space<vmem>>, vector<1x256xf32>
    %22 = arith.subf %20, %21 : vector<1x256xf32>
    %c0_11 = arith.constant 0 : index
    %c0_12 = arith.constant 0 : index
    %23 = vector.load %arg7[%c0_11, %c0_12] : memref<1x256xf32, #tpu.memory_space<vmem>>, vector<1x256xf32>
    %c1_13 = arith.constant 1 : index
    %c0_14 = arith.constant 0 : index
    %24 = vector.load %arg5[%c1_13, %c0_14] : memref<4x256xf32, #tpu.memory_space<vmem>>, vector<1x256xf32>
    %25 = arith.mulf %24, %22 : vector<1x256xf32>
    %26 = arith.mulf %25, %22 : vector<1x256xf32>
    %c2 = arith.constant 2 : index
    %c0_15 = arith.constant 0 : index
    %27 = vector.load %arg5[%c2, %c0_15] : memref<4x256xf32, #tpu.memory_space<vmem>>, vector<1x256xf32>
    %28 = arith.mulf %27, %22 : vector<1x256xf32>
    %29 = arith.addf %26, %28 : vector<1x256xf32>
    %c3 = arith.constant 3 : index
    %c0_16 = arith.constant 0 : index
    %30 = vector.load %arg5[%c3, %c0_16] : memref<4x256xf32, #tpu.memory_space<vmem>>, vector<1x256xf32>
    %31 = arith.addf %29, %30 : vector<1x256xf32>
    %32 = arith.addf %23, %31 : vector<1x256xf32>
    %c0_17 = arith.constant 0 : index
    %c0_18 = arith.constant 0 : index
    %33 = vector.load %arg7[%c0_17, %c0_18] : memref<1x256xf32, #tpu.memory_space<vmem>>, vector<1x256xf32>
    tpu.vector_store %arg7[%c0_17, %c0_18], %32 {strides = array<i32>} : memref<1x256xf32, #tpu.memory_space<vmem>>, vector<1x256xf32>,
    %c0_i32_19 = arith.constant 0 : i32
    %34 = arith.cmpi eq, %arg1, %c0_i32_19 : i32
    %35 = arith.extui %34 : i1 to i32
    %c0_i32_20 = arith.constant 0 : i32
    %36 = arith.cmpi ne, %35, %c0_i32_20 : i32
    scf.if %36 {
      %c0_21 = arith.constant 0 : index
      %c0_22 = arith.constant 0 : index
      %37 = vector.load %arg7[%c0_21, %c0_22] : memref<1x256xf32, #tpu.memory_space<vmem>>, vector<1x256xf32>
      %38 = vector.shape_cast %37 : vector<1x256xf32> to vector<1x1x256xf32>
      %cst_23 = arith.constant dense<0.000000e+00> : vector<1xf32>
      %39 = vector.multi_reduction <add>, %38, %cst_23 [1, 2] : vector<1x1x256xf32> to vector<1xf32>
      %40 = vector.shape_cast %39 : vector<1xf32> to vector<1x1x1xf32>
      %41 = vector.extract %40[0, 0, 0] : f32 from vector<1x1x1xf32>
      %42 = vector.broadcast %41 : f32 to vector<1x1xf32>
      %c0_24 = arith.constant 0 : index
      %c0_25 = arith.constant 0 : index
      %43 = vector.load %arg6[%c0_24, %c0_25] : memref<1x1xf32, #tpu.memory_space<vmem>>, vector<1x1xf32>
      tpu.vector_store %arg6[%c0_24, %c0_25], %42 {strides = array<i32>} : memref<1x1xf32, #tpu.memory_space<vmem>>, vector<1x1xf32>,
    } else {
    }
    return
  }
  func.func @transform_0(%arg0: i32, %arg1: i32) -> (i32, i32) {
    %c1_i32 = arith.constant 1 : i32
    %0 = arith.muli %arg0, %c1_i32 : i32
    %1 = arith.addi %0, %arg1 : i32
    %c0_i32 = arith.constant 0 : i32
    %c0_i32_0 = arith.constant 0 : i32
    return %c0_i32, %1 : i32, i32
  }
  func.func @transform_1(%arg0: i32, %arg1: i32) -> (i32, i32) {
    %c0_i32 = arith.constant 0 : i32
    %c0_i32_0 = arith.constant 0 : i32
    %c0_i32_1 = arith.constant 0 : i32
    return %c0_i32, %c0_i32_0 : i32, i32
  }
  func.func @transform_2(%arg0: i32, %arg1: i32) -> (i32, i32) {
    %c0_i32 = arith.constant 0 : i32
    %c0_i32_0 = arith.constant 0 : i32
    %c0_i32_1 = arith.constant 0 : i32
    return %c0_i32, %c0_i32_0 : i32, i32
  }
  func.func @transform_3(%arg0: i32, %arg1: i32) -> (i32, i32) {
    %c1_i32 = arith.constant 1 : i32
    %0 = arith.muli %arg0, %c1_i32 : i32
    %1 = arith.addi %0, %arg1 : i32
    %c0_i32 = arith.constant 0 : i32
    %c0_i32_0 = arith.constant 0 : i32
    return %c0_i32, %1 : i32, i32
  }
  func.func @transform_4(%arg0: i32, %arg1: i32) -> (i32, i32) {
    %c0_i32 = arith.constant 0 : i32
    %c0_i32_0 = arith.constant 0 : i32
    return %arg0, %c0_i32 : i32, i32
  }
}

</mosaic_0001>

<llo_original>
// kernel: tpu_custom_call.1
$region0: #{tpu_custom_call.1}
  #allocation0 [shape = 'u32[]', space=smem, size = 0x4, offset = 0x4, fixed_abs, tag = 'smem constant byte address 0x4 - core index']
  #allocation1 [shape = 'u32[72,128]{1,0:T(1,128)}', space=vmem, size = 0x9000, scoped, tag = 'internal scratch']
  #allocation2 [shape = 'f32[1,256]{1,0:T(1,128)}', space=vmem, size = 0x400, scoped, tag = 'scratch operand']
  %s0 = inlined_call_operand.hbm [shape: s32[2,256], index: 0, kind: input, shape index: {}]
  %s1 = inlined_call_operand.hbm [shape: f32[32,128], index: 1, kind: input, shape index: {}]
  %s2 = inlined_call_operand.hbm [shape: f32[32,128], index: 2, kind: input, shape index: {}]
  %s3 = inlined_call_operand.hbm [shape: f32[4,256], index: 3, kind: input, shape index: {}]
  %s4 = inlined_call_operand.hbm [shape: f32[1,1], index: 4, kind: output, shape index: {}]
  %s5 = sld [smem:[#allocation0]]
  $region50: #{tpu_custom_call.1} parent=0
    _
  %s7 = ssub.s32 1, %s5
  %s8 = scalar_select 0, %s7, %s5
  $region1: #{tpu_custom_call.1} parent=0
    #allocation3 [shape = 'u8[2048]{0}', space=vmem, size = 0x800, scoped, tag = 'input window, operand 0, single buffered']
    #allocation4 [shape = 's32[1]{0}', space=sflag, size = 0x4, scoped, tag = 'scoped memory for tpu_custom_call.1']
    #allocation5 [shape = 's32[1]{0}', space=sflag, size = 0x4, scoped, tag = 'scoped memory for tpu_custom_call.1']
    #allocation6 [shape = 'u8[16384]{0}', space=vmem, size = 0x4000, scoped, tag = 'input window, operand 1, single buffered']
    #allocation7 [shape = 's32[1]{0}', space=sflag, size = 0x4, scoped, tag = 'scoped memory for tpu_custom_call.1']
    #allocation8 [shape = 'u8[16384]{0}', space=vmem, size = 0x4000, scoped, tag = 'input window, operand 2, single buffered']
    #allocation9 [shape = 'u8[4096]{0}', space=vmem, size = 0x1000, scoped, tag = 'input window, operand 3, single buffered']
    #allocation10 [shape = 's32[1]{0}', space=sflag, size = 0x4, scoped, tag = 'scoped memory for tpu_custom_call.1']
    #allocation11 [shape = 'u8[512]{0}', space=vmem, size = 0x400, scoped, tag = 'output window, operand 0, single buffered']
    %9 = vsyncpa [#allocation4], 0
    %10 = vsyncpa [#allocation7], 0
    %11 = vsyncpa [#allocation10], 0
    %12 = vsyncpa [#allocation5], 0
    // Predicated region
    $region2: #{tpu_custom_call.1} parent=1 // pred_check
      _
    $region3: #{tpu_custom_call.1} parent=1 // pred_check_branch
      %14 = sbr.rel (0) target = $region5
    $region4: #{tpu_custom_call.1} parent=1 // pred_region
      %s15 = sadd.s32 0, 0
      %s16 = smul.u32 2, %s15
      %18 = vsyncadd [#allocation4], 0
      %s19 = smul.addr %s16, 2
      %s20 = scalar_lea.hbm %s0, %s19
      %s22 = sshll.u32 %s20, 4
      %s23 = int_to_ptr.hbm [resolvable:$true] %s22
      %s24 = sshll.u32 [#allocation3], 4
      %s25 = int_to_ptr.vmem [resolvable:$true] %s24
      %27 = dma.hbm_to_vmem [thread:$0]  %s23, 64, %s25, [#allocation4]
    $region5: #{tpu_custom_call.1} parent=1 // pred_fallthru
      _
    // Predicated region
    $region6: #{tpu_custom_call.1} parent=1 // pred_check
      _
    $region7: #{tpu_custom_call.1} parent=1 // pred_check_branch
      %29 = sbr.rel (0) target = $region9
    $region8: #{tpu_custom_call.1} parent=1 // pred_region
      %31 = vsyncadd [#allocation7], 0
      %s32 = sshll.u32 %s1, 4
      %s33 = int_to_ptr.hbm [resolvable:$true] %s32
      %s34 = sshll.u32 [#allocation6], 4
      %s35 = int_to_ptr.vmem [resolvable:$true] %s34
      %40 = dma.hbm_to_vmem [thread:$0]  %s33, 512, %s35, [#allocation7], 128, 128, 8
    $region9: #{tpu_custom_call.1} parent=1 // pred_fallthru
      _
    // Predicated region
    $region10: #{tpu_custom_call.1} parent=1 // pred_check
      _
    $region11: #{tpu_custom_call.1} parent=1 // pred_check_branch
      %42 = sbr.rel (0) target = $region13
    $region12: #{tpu_custom_call.1} parent=1 // pred_region
      %44 = vsyncadd [#allocation7], 0
      %s45 = sshll.u32 %s2, 4
      %s46 = int_to_ptr.hbm [resolvable:$true] %s45
      %s47 = sshll.u32 [#allocation8], 4
      %s48 = int_to_ptr.vmem [resolvable:$true] %s47
      %53 = dma.hbm_to_vmem [thread:$0]  %s46, 512, %s48, [#allocation7], 128, 128, 8
    $region13: #{tpu_custom_call.1} parent=1 // pred_fallthru
      _
    // Predicated region
    $region14: #{tpu_custom_call.1} parent=1 // pred_check
      _
    $region15: #{tpu_custom_call.1} parent=1 // pred_check_branch
      %55 = sbr.rel (0) target = $region17
    $region16: #{tpu_custom_call.1} parent=1 // pred_region
      %s56 = sadd.s32 0, 0
      %s57 = smul.u32 2, %s56
      %59 = vsyncadd [#allocation10], 0
      %s60 = smul.addr %s57, 4
      %s61 = scalar_lea.hbm %s3, %s60
      %s63 = sshll.u32 %s61, 4
      %s64 = int_to_ptr.hbm [resolvable:$true] %s63
      %s65 = sshll.u32 [#allocation9], 4
      %s66 = int_to_ptr.vmem [resolvable:$true] %s65
      %68 = dma.hbm_to_vmem [thread:$0]  %s64, 128, %s66, [#allocation10]
    $region17: #{tpu_custom_call.1} parent=1 // pred_fallthru
      _
    // Predicated region
    $region18: #{tpu_custom_call.1} parent=1 // pred_check
      _
    $region19: #{tpu_custom_call.1} parent=1 // pred_check_branch
      %70 = sbr.rel (0) target = $region21
    $region20: #{tpu_custom_call.1} parent=1 // pred_region
      %72 = dma.done [#allocation4], 64
    $region21: #{tpu_custom_call.1} parent=1 // pred_fallthru
      _
    // Predicated region
    $region22: #{tpu_custom_call.1} parent=1 // pred_check
      _
    $region23: #{tpu_custom_call.1} parent=1 // pred_check_branch
      %74 = sbr.rel (0) target = $region25
    $region24: #{tpu_custom_call.1} parent=1 // pred_region
      %76 = dma.done [#allocation7], 512
    $region25: #{tpu_custom_call.1} parent=1 // pred_fallthru
      _
    // Predicated region
    $region26: #{tpu_custom_call.1} parent=1 // pred_check
      _
    $region27: #{tpu_custom_call.1} parent=1 // pred_check_branch
      %78 = sbr.rel (0) target = $region29
    $region28: #{tpu_custom_call.1} parent=1 // pred_region
      %80 = dma.done [#allocation7], 512
    $region29: #{tpu_custom_call.1} parent=1 // pred_fallthru
      _
    // Predicated region
    $region30: #{tpu_custom_call.1} parent=1 // pred_check
      _
    $region31: #{tpu_custom_call.1} parent=1 // pred_check_branch
      %82 = sbr.rel (0) target = $region33
    $region32: #{tpu_custom_call.1} parent=1 // pred_region
      %84 = dma.done [#allocation10], 128
    $region33: #{tpu_custom_call.1} parent=1 // pred_fallthru
      _
    %s85 = sadd.s32 0, 0
    %s86 = smul.u32 2, %s85
    %s87 = sadd.s32 0, 0
    %s88 = smul.u32 2, %s87
    %p89 = scmp.eq.s32.totalorder 0, 0
    // Predicated region
    $region34: #{tpu_custom_call.1} parent=1 // pred_check
      %p90 = pneg %p89
    $region35: #{tpu_custom_call.1} parent=1 // pred_check_branch
      %92 = sbr.rel (%p90) target = $region37
    $region36: #{tpu_custom_call.1} parent=1 // pred_region
      %v93 = vlaneseq
      %vm94 = vcmp.ge.s32.totalorder %v93, 0
      %vm95 = vcmp.lt.s32.totalorder %v93, 256
      %vm96 = vmand %vm94, %vm95
      %97 = vst.msk [vmem:[#allocation2] sm:$0x3] %vm96, 0.0
    $region37: #{tpu_custom_call.1} parent=1 // pred_fallthru
      _
    %v98 = vlaneseq
    %v99 = vshrl.u32 %v98, 7
    %v100 = vadd.s32 %v99, 8
    %v101 = vadd.s32 %v99, 16
    %v102 = vadd.s32 %v99, 24
    %v103 = vadd.s32 %v99, 32
    %v104 = vadd.s32 %v99, 40
    %v105 = vadd.s32 %v99, 48
    %v106 = vadd.s32 %v99, 56
    %v107 = vadd.s32 %v99, 64
    %v108 = vadd.s32 %v99, 72
    %v109 = vadd.s32 %v99, 80
    %v110 = vadd.s32 %v99, 88
    %v111 = vadd.s32 %v99, 96
    %v112 = vadd.s32 %v99, 104
    %v113 = vadd.s32 %v99, 112
    %v114 = vadd.s32 %v99, 120
    %v115 = vld [vmem:[#allocation3] ss:$2 sm:$0x3]
    %v116 = vperm.slane %v115, 0
    %v117 = vperm.slane %v115, 1
    %vm118 = vcmp.eq.s32.totalorder %v99, %v116
    %vm119 = vcmp.eq.s32.totalorder %v99, %v117
    %vm120 = vcmp.eq.s32.totalorder %v100, %v116
    %vm121 = vcmp.eq.s32.totalorder %v100, %v117
    %vm122 = vcmp.eq.s32.totalorder %v101, %v116
    %vm123 = vcmp.eq.s32.totalorder %v101, %v117
    %vm124 = vcmp.eq.s32.totalorder %v102, %v116
    %vm125 = vcmp.eq.s32.totalorder %v102, %v117
    %vm126 = vcmp.eq.s32.totalorder %v103, %v116
    %vm127 = vcmp.eq.s32.totalorder %v103, %v117
    %vm128 = vcmp.eq.s32.totalorder %v104, %v116
    %vm129 = vcmp.eq.s32.totalorder %v104, %v117
    %vm130 = vcmp.eq.s32.totalorder %v105, %v116
    %vm131 = vcmp.eq.s32.totalorder %v105, %v117
    %vm132 = vcmp.eq.s32.totalorder %v106, %v116
    %vm133 = vcmp.eq.s32.totalorder %v106, %v117
    %vm134 = vcmp.eq.s32.totalorder %v107, %v116
    %vm135 = vcmp.eq.s32.totalorder %v107, %v117
    %vm136 = vcmp.eq.s32.totalorder %v108, %v116
    %vm137 = vcmp.eq.s32.totalorder %v108, %v117
    %vm138 = vcmp.eq.s32.totalorder %v109, %v116
    %vm139 = vcmp.eq.s32.totalorder %v109, %v117
    %vm140 = vcmp.eq.s32.totalorder %v110, %v116
    %vm141 = vcmp.eq.s32.totalorder %v110, %v117
    %vm142 = vcmp.eq.s32.totalorder %v111, %v116
    %vm143 = vcmp.eq.s32.totalorder %v111, %v117
    %vm144 = vcmp.eq.s32.totalorder %v112, %v116
    %vm145 = vcmp.eq.s32.totalorder %v112, %v117
    %vm146 = vcmp.eq.s32.totalorder %v113, %v116
    %vm147 = vcmp.eq.s32.totalorder %v113, %v117
    %vm148 = vcmp.eq.s32.totalorder %v114, %v116
    %vm149 = vcmp.eq.s32.totalorder %v114, %v117
    %v150 = vsel %vm118, 1, 0
    %v151 = vsel %vm119, 1, 0
    %v152 = vsel %vm120, 1, 0
    %v153 = vsel %vm121, 1, 0
    %v154 = vsel %vm122, 1, 0
    %v155 = vsel %vm123, 1, 0
    %v156 = vsel %vm124, 1, 0
    %v157 = vsel %vm125, 1, 0
    %v158 = vsel %vm126, 1, 0
    %v159 = vsel %vm127, 1, 0
    %v160 = vsel %vm128, 1, 0
    %v161 = vsel %vm129, 1, 0
    %v162 = vsel %vm130, 1, 0
    %v163 = vsel %vm131, 1, 0
    %v164 = vsel %vm132, 1, 0
    %v165 = vsel %vm133, 1, 0
    %v166 = vsel %vm134, 1, 0
    %v167 = vsel %vm135, 1, 0
    %v168 = vsel %vm136, 1, 0
    %v169 = vsel %vm137, 1, 0
    %v170 = vsel %vm138, 1, 0
    %v171 = vsel %vm139, 1, 0
    %v172 = vsel %vm140, 1, 0
    %v173 = vsel %vm141, 1, 0
    %v174 = vsel %vm142, 1, 0
    %v175 = vsel %vm143, 1, 0
    %v176 = vsel %vm144, 1, 0
    %v177 = vsel %vm145, 1, 0
    %v178 = vsel %vm146, 1, 0
    %v179 = vsel %vm147, 1, 0
    %v180 = vsel %vm148, 1, 0
    %v181 = vsel %vm149, 1, 0
    %v182 = vcvt.s32.f32 %v150
    %v183 = vcvt.s32.f32 %v151
    %v184 = vcvt.s32.f32 %v152
    %v185 = vcvt.s32.f32 %v153
    %v186 = vcvt.s32.f32 %v154
    %v187 = vcvt.s32.f32 %v155
    %v188 = vcvt.s32.f32 %v156
    %v189 = vcvt.s32.f32 %v157
    %v190 = vcvt.s32.f32 %v158
    %v191 = vcvt.s32.f32 %v159
    %v192 = vcvt.s32.f32 %v160
    %v193 = vcvt.s32.f32 %v161
    %v194 = vcvt.s32.f32 %v162
    %v195 = vcvt.s32.f32 %v163
    %v196 = vcvt.s32.f32 %v164
    %v197 = vcvt.s32.f32 %v165
    %v198 = vcvt.s32.f32 %v166
    %v199 = vcvt.s32.f32 %v167
    %v200 = vcvt.s32.f32 %v168
    %v201 = vcvt.s32.f32 %v169
    %v202 = vcvt.s32.f32 %v170
    %v203 = vcvt.s32.f32 %v171
    %v204 = vcvt.s32.f32 %v172
    %v205 = vcvt.s32.f32 %v173
    %v206 = vcvt.s32.f32 %v174
    %v207 = vcvt.s32.f32 %v175
    %v208 = vcvt.s32.f32 %v176
    %v209 = vcvt.s32.f32 %v177
    %v210 = vcvt.s32.f32 %v178
    %v211 = vcvt.s32.f32 %v179
    %v212 = vcvt.s32.f32 %v180
    %v213 = vcvt.s32.f32 %v181
    %s214 = scalar_lea.vmem [#allocation3], 1
    %v215 = vld [vmem:[%s214] ss:$2 sm:$0x3]
    %v216 = vperm.slane %v215, 0
    %v217 = vperm.slane %v215, 1
    %vm218 = vcmp.eq.s32.totalorder %v99, %v216
    %vm219 = vcmp.eq.s32.totalorder %v99, %v217
    %vm220 = vcmp.eq.s32.totalorder %v100, %v216
    %vm221 = vcmp.eq.s32.totalorder %v100, %v217
    %vm222 = vcmp.eq.s32.totalorder %v101, %v216
    %vm223 = vcmp.eq.s32.totalorder %v101, %v217
    %vm224 = vcmp.eq.s32.totalorder %v102, %v216
    %vm225 = vcmp.eq.s32.totalorder %v102, %v217
    %vm226 = vcmp.eq.s32.totalorder %v103, %v216
    %vm227 = vcmp.eq.s32.totalorder %v103, %v217
    %vm228 = vcmp.eq.s32.totalorder %v104, %v216
    %vm229 = vcmp.eq.s32.totalorder %v104, %v217
    %vm230 = vcmp.eq.s32.totalorder %v105, %v216
    %vm231 = vcmp.eq.s32.totalorder %v105, %v217
    %vm232 = vcmp.eq.s32.totalorder %v106, %v216
    %vm233 = vcmp.eq.s32.totalorder %v106, %v217
    %vm234 = vcmp.eq.s32.totalorder %v107, %v216
    %vm235 = vcmp.eq.s32.totalorder %v107, %v217
    %vm236 = vcmp.eq.s32.totalorder %v108, %v216
    %vm237 = vcmp.eq.s32.totalorder %v108, %v217
    %vm238 = vcmp.eq.s32.totalorder %v109, %v216
    %vm239 = vcmp.eq.s32.totalorder %v109, %v217
    %vm240 = vcmp.eq.s32.totalorder %v110, %v216
    %vm241 = vcmp.eq.s32.totalorder %v110, %v217
    %vm242 = vcmp.eq.s32.totalorder %v111, %v216
    %vm243 = vcmp.eq.s32.totalorder %v111, %v217
    %vm244 = vcmp.eq.s32.totalorder %v112, %v216
    %vm245 = vcmp.eq.s32.totalorder %v112, %v217
    %vm246 = vcmp.eq.s32.totalorder %v113, %v216
    %vm247 = vcmp.eq.s32.totalorder %v113, %v217
    %vm248 = vcmp.eq.s32.totalorder %v114, %v216
    %vm249 = vcmp.eq.s32.totalorder %v114, %v217
    %v250 = vsel %vm218, 1, 0
    %v251 = vsel %vm219, 1, 0
    %v252 = vsel %vm220, 1, 0
    %v253 = vsel %vm221, 1, 0
    %v254 = vsel %vm222, 1, 0
    %v255 = vsel %vm223, 1, 0
    %v256 = vsel %vm224, 1, 0
    %v257 = vsel %vm225, 1, 0
    %v258 = vsel %vm226, 1, 0
    %v259 = vsel %vm227, 1, 0
    %v260 = vsel %vm228, 1, 0
    %v261 = vsel %vm229, 1, 0
    %v262 = vsel %vm230, 1, 0
    %v263 = vsel %vm231, 1, 0
    %v264 = vsel %vm232, 1, 0
    %v265 = vsel %vm233, 1, 0
    %v266 = vsel %vm234, 1, 0
    %v267 = vsel %vm235, 1, 0
    %v268 = vsel %vm236, 1, 0
    %v269 = vsel %vm237, 1, 0
    %v270 = vsel %vm238, 1, 0
    %v271 = vsel %vm239, 1, 0
    %v272 = vsel %vm240, 1, 0
    %v273 = vsel %vm241, 1, 0
    %v274 = vsel %vm242, 1, 0
    %v275 = vsel %vm243, 1, 0
    %v276 = vsel %vm244, 1, 0
    %v277 = vsel %vm245, 1, 0
    %v278 = vsel %vm246, 1, 0
    %v279 = vsel %vm247, 1, 0
    %v280 = vsel %vm248, 1, 0
    %v281 = vsel %vm249, 1, 0
    %v282 = vcvt.s32.f32 %v250
    %v283 = vcvt.s32.f32 %v251
    %v284 = vcvt.s32.f32 %v252
    %v285 = vcvt.s32.f32 %v253
    %v286 = vcvt.s32.f32 %v254
    %v287 = vcvt.s32.f32 %v255
    %v288 = vcvt.s32.f32 %v256
    %v289 = vcvt.s32.f32 %v257
    %v290 = vcvt.s32.f32 %v258
    %v291 = vcvt.s32.f32 %v259
    %v292 = vcvt.s32.f32 %v260
    %v293 = vcvt.s32.f32 %v261
    %v294 = vcvt.s32.f32 %v262
    %v295 = vcvt.s32.f32 %v263
    %v296 = vcvt.s32.f32 %v264
    %v297 = vcvt.s32.f32 %v265
    %v298 = vcvt.s32.f32 %v266
    %v299 = vcvt.s32.f32 %v267
    %v300 = vcvt.s32.f32 %v268
    %v301 = vcvt.s32.f32 %v269
    %v302 = vcvt.s32.f32 %v270
    %v303 = vcvt.s32.f32 %v271
    %v304 = vcvt.s32.f32 %v272
    %v305 = vcvt.s32.f32 %v273
    %v306 = vcvt.s32.f32 %v274
    %v307 = vcvt.s32.f32 %v275
    %v308 = vcvt.s32.f32 %v276
    %v309 = vcvt.s32.f32 %v277
    %v310 = vcvt.s32.f32 %v278
    %v311 = vcvt.s32.f32 %v279
    %v312 = vcvt.s32.f32 %v280
    %v313 = vcvt.s32.f32 %v281
    %v314 = vld [vmem:[#allocation6] sm:$0xff]
    %v315 = vld [vmem:[#allocation6 + $0x8] sm:$0xff]
    %v316 = vld [vmem:[#allocation6 + $0x10] sm:$0xff]
    %v317 = vld [vmem:[#allocation6 + $0x18] sm:$0xff]
    %318 = vmatpush.msra.mxu0 %v212
    %319 = vmatpush.msra.mxu0 %v210
    %320 = vmatpush.msra.mxu0 %v208
    %321 = vmatpush.msra.mxu0 %v206
    %322 = vmatpush.msra.mxu0 %v204
    %323 = vmatpush.msra.mxu0 %v202
    %324 = vmatpush.msra.mxu0 %v200
    %325 = vmatpush.msra.mxu0 %v198
    %326 = vmatpush.msra.mxu0 %v196
    %327 = vmatpush.msra.mxu0 %v194
    %328 = vmatpush.msra.mxu0 %v192
    %329 = vmatpush.msra.mxu0 %v190
    %330 = vmatpush.msra.mxu0 %v188
    %331 = vmatpush.msra.mxu0 %v186
    %332 = vmatpush.msra.mxu0 %v184
    %333 = vmatpush.msra.mxu0 %v182
    %334 = vmatmul.f32.gmra.mxu0 %v314
    %v335 = vpop.f32.mrf.mxu0
    %v336 = vadd.f32 0.0, %v335
    %337 = vmatmul.f32.gmra.mxu0 %v315
    %v338 = vpop.f32.mrf.mxu0
    %v339 = vadd.f32 0.0, %v338
    %340 = vmatmul.f32.gmra.mxu0 %v316
    %v341 = vpop.f32.mrf.mxu0
    %v342 = vadd.f32 0.0, %v341
    %343 = vmatmul.f32.gmra.mxu0 %v317
    %v344 = vpop.f32.mrf.mxu0
    %v345 = vadd.f32 0.0, %v344
    %346 = vdwg.mxu0
    %347 = vmatpush.msra.mxu0 %v213
    %348 = vmatpush.msra.mxu0 %v211
    %349 = vmatpush.msra.mxu0 %v209
    %350 = vmatpush.msra.mxu0 %v207
    %351 = vmatpush.msra.mxu0 %v205
    %352 = vmatpush.msra.mxu0 %v203
    %353 = vmatpush.msra.mxu0 %v201
    %354 = vmatpush.msra.mxu0 %v199
    %355 = vmatpush.msra.mxu0 %v197
    %356 = vmatpush.msra.mxu0 %v195
    %357 = vmatpush.msra.mxu0 %v193
    %358 = vmatpush.msra.mxu0 %v191
    %359 = vmatpush.msra.mxu0 %v189
    %360 = vmatpush.msra.mxu0 %v187
    %361 = vmatpush.msra.mxu0 %v185
    %362 = vmatpush.msra.mxu0 %v183
    %363 = vmatmul.f32.gmra.mxu0 %v314
    %v364 = vpop.f32.mrf.mxu0
    %v365 = vadd.f32 0.0, %v364
    %366 = vmatmul.f32.gmra.mxu0 %v315
    %v367 = vpop.f32.mrf.mxu0
    %v368 = vadd.f32 0.0, %v367
    %369 = vmatmul.f32.gmra.mxu0 %v316
    %v370 = vpop.f32.mrf.mxu0
    %v371 = vadd.f32 0.0, %v370
    %372 = vmatmul.f32.gmra.mxu0 %v317
    %v373 = vpop.f32.mrf.mxu0
    %v374 = vadd.f32 0.0, %v373
    %375 = vdwg.mxu0
    %v376 = vld [vmem:[#allocation8] sm:$0xff]
    %v377 = vld [vmem:[#allocation8 + $0x8] sm:$0xff]
    %v378 = vld [vmem:[#allocation8 + $0x10] sm:$0xff]
    %v379 = vld [vmem:[#allocation8 + $0x18] sm:$0xff]
    %380 = vmatpush.msra.mxu0 %v312
    %381 = vmatpush.msra.mxu0 %v310
    %382 = vmatpush.msra.mxu0 %v308
    %383 = vmatpush.msra.mxu0 %v306
    %384 = vmatpush.msra.mxu0 %v304
    %385 = vmatpush.msra.mxu0 %v302
    %386 = vmatpush.msra.mxu0 %v300
    %387 = vmatpush.msra.mxu0 %v298
    %388 = vmatpush.msra.mxu0 %v296
    %389 = vmatpush.msra.mxu0 %v294
    %390 = vmatpush.msra.mxu0 %v292
    %391 = vmatpush.msra.mxu0 %v290
    %392 = vmatpush.msra.mxu0 %v288
    %393 = vmatpush.msra.mxu0 %v286
    %394 = vmatpush.msra.mxu0 %v284
    %395 = vmatpush.msra.mxu0 %v282
    %396 = vmatmul.f32.gmra.mxu0 %v376
    %v397 = vpop.f32.mrf.mxu0
    %v398 = vadd.f32 0.0, %v397
    %399 = vmatmul.f32.gmra.mxu0 %v377
    %v400 = vpop.f32.mrf.mxu0
    %v401 = vadd.f32 0.0, %v400
    %402 = vmatmul.f32.gmra.mxu0 %v378
    %v403 = vpop.f32.mrf.mxu0
    %v404 = vadd.f32 0.0, %v403
    %405 = vmatmul.f32.gmra.mxu0 %v379
    %v406 = vpop.f32.mrf.mxu0
    %v407 = vadd.f32 0.0, %v406
    %408 = vdwg.mxu0
    %409 = vmatpush.msra.mxu0 %v313
    %410 = vmatpush.msra.mxu0 %v311
    %411 = vmatpush.msra.mxu0 %v309
    %412 = vmatpush.msra.mxu0 %v307
    %413 = vmatpush.msra.mxu0 %v305
    %414 = vmatpush.msra.mxu0 %v303
    %415 = vmatpush.msra.mxu0 %v301
    %416 = vmatpush.msra.mxu0 %v299
    %417 = vmatpush.msra.mxu0 %v297
    %418 = vmatpush.msra.mxu0 %v295
    %419 = vmatpush.msra.mxu0 %v293
    %420 = vmatpush.msra.mxu0 %v291
    %421 = vmatpush.msra.mxu0 %v289
    %422 = vmatpush.msra.mxu0 %v287
    %423 = vmatpush.msra.mxu0 %v285
    %424 = vmatpush.msra.mxu0 %v283
    %425 = vmatmul.f32.gmra.mxu0 %v376
    %v426 = vpop.f32.mrf.mxu0
    %v427 = vadd.f32 0.0, %v426
    %428 = vmatmul.f32.gmra.mxu0 %v377
    %v429 = vpop.f32.mrf.mxu0
    %v430 = vadd.f32 0.0, %v429
    %431 = vmatmul.f32.gmra.mxu0 %v378
    %v432 = vpop.f32.mrf.mxu0
    %v433 = vadd.f32 0.0, %v432
    %434 = vmatmul.f32.gmra.mxu0 %v379
    %v435 = vpop.f32.mrf.mxu0
    %v436 = vadd.f32 0.0, %v435
    %437 = vdwg.mxu0
    %v438 = vmul.f32 %v336, %v398
    %v439 = vmul.f32 %v365, %v427
    %v440 = vmul.f32 %v339, %v401
    %v441 = vmul.f32 %v368, %v430
    %v442 = vmul.f32 %v342, %v404
    %v443 = vmul.f32 %v371, %v433
    %v444 = vmul.f32 %v345, %v407
    %v445 = vmul.f32 %v374, %v436
    %v446 = vadd.f32 %v438, %v440
    %v447 = vadd.f32 %v446, %v442
    %v448 = vadd.f32 %v447, %v444
    %v449 = vrot.slane %v448, 4
    %v450 = vadd.f32 %v448, %v449
    %v451 = vrot.slane %v450, 2
    %v452 = vadd.f32 %v450, %v451
    %v453 = vrot.slane %v452, 1
    %v454 = vadd.f32 %v452, %v453
    %v455 = vadd.f32 %v439, %v441
    %v456 = vadd.f32 %v455, %v443
    %v457 = vadd.f32 %v456, %v445
    %v458 = vrot.slane %v457, 4
    %v459 = vadd.f32 %v457, %v458
    %v460 = vrot.slane %v459, 2
    %v461 = vadd.f32 %v459, %v460
    %v462 = vrot.slane %v461, 1
    %v463 = vadd.f32 %v461, %v462
    %v464 = vld [vmem:[#allocation9] ss:$4 sm:$0x3]
    %v466 = vperm.slane %v464, 0
    %v467 = vperm.slane %v464, 1
    %v470 = vsub.f32 %v454, %v466
    %v471 = vsub.f32 %v463, %v467
    %v472 = vld [vmem:[#allocation2] sm:$0x3]
    %s473 = scalar_lea.vmem [#allocation9], 1
    %v474 = vld [vmem:[%s473] ss:$4 sm:$0x3]
    %v477 = vrot.slane %v471, 7
    %vm478 = vcmask 1040384
    %v479 = vsel %vm478, %v470, %v477
    %v481 = vmul.f32 %v474, %v479
    %v482 = vmul.f32 %v481, %v479
    %s483 = scalar_lea.vmem [#allocation9], 2
    %v484 = vld [vmem:[%s483] ss:$4 sm:$0x3]
    %v485 = vmul.f32 %v484, %v479
    %v486 = vadd.f32 %v482, %v485
    %s487 = scalar_lea.vmem [#allocation9], 3
    %v488 = vld [vmem:[%s487] ss:$4 sm:$0x3]
    %v489 = vadd.f32 %v486, %v488
    %v490 = vadd.f32 %v472, %v489
    %v491 = vlaneseq
    %vm492 = vcmp.ge.s32.totalorder %v491, 0
    %vm493 = vcmp.lt.s32.totalorder %v491, 256
    %vm494 = vmand %vm492, %vm493
    %495 = vst.msk [vmem:[#allocation2] sm:$0x3] %vm494, %v490
    // Predicated region
    $region38: #{tpu_custom_call.1} parent=1 // pred_check
      %p496 = pneg %p89
    $region39: #{tpu_custom_call.1} parent=1 // pred_check_branch
      %498 = sbr.rel (%p496) target = $region41
    $region40: #{tpu_custom_call.1} parent=1 // pred_region
      %v499 = vld [vmem:[#allocation2] sm:$0x3]
      %v501 = vperm.slane %v499, 0
      %v502 = vperm.slane %v499, 1
      %v505 = vsel %vm478, %v501, 0.0
      %v506 = vsel %vm478, %v502, 0.0
      %v507 = vadd.f32 %v505, %v506
      %508 = vadd.xlane.f32.xlu0 %v507
      %v509 = vpop.xlane.xlu0 %508
      %v510 = vrot.slane %v509, 4
      %v511 = vadd.f32 %v509, %v510
      %v512 = vrot.slane %v511, 2
      %v513 = vadd.f32 %v511, %v512
      %v514 = vrot.slane %v513, 1
      %v515 = vadd.f32 %v513, %v514
      %s516 = vtos %v515
      %v517 = vstv %s516
      %vm518 = vcmask 0
      %519 = vst.msk [vmem:[#allocation11] sm:$0x1] %vm518, %v517
    $region41: #{tpu_custom_call.1} parent=1 // pred_fallthru
      _
    // Predicated region
    $region42: #{tpu_custom_call.1} parent=1 // pred_check
      _
    $region43: #{tpu_custom_call.1} parent=1 // pred_check_branch
      %521 = sbr.rel (0) target = $region45
    $region44: #{tpu_custom_call.1} parent=1 // pred_region
      %523 = vsyncadd [#allocation5], 0
      %s525 = sshll.u32 [#allocation11], 4
      %s526 = int_to_ptr.vmem [resolvable:$true] %s525
      %s527 = sshll.u32 %s4, 4
      %s528 = int_to_ptr.hbm [resolvable:$true] %s527
      %530 = dma.vmem_to_hbm [thread:$0]  %s526, 16, %s528, [#allocation5]
    $region45: #{tpu_custom_call.1} parent=1 // pred_fallthru
      _
    // Predicated region
    $region46: #{tpu_custom_call.1} parent=1 // pred_check
      _
    $region47: #{tpu_custom_call.1} parent=1 // pred_check_branch
      %532 = sbr.rel (0) target = $region49
    $region48: #{tpu_custom_call.1} parent=1 // pred_region
      %534 = dma.done [#allocation5], 16
    $region49: #{tpu_custom_call.1} parent=1 // pred_fallthru
      _
    %535 = vsyncpa [#allocation4], 1
    %536 = vsyncpa [#allocation7], 1
    %537 = vsyncpa [#allocation10], 1
    %538 = vsyncpa [#allocation5], 1

</llo_original>
